<compile_context>
chip_gen: v7x
topology: tpu7x:2x2x1
jax: 0.10.0
libtpu: 0.0.40
codegen_flags: <defaults>
</compile_context>

<pallas_src>
import functools
import math

import jax
import jax.numpy as jnp
from jax.experimental import pallas as pl
from jax.experimental.pallas import tpu as pltpu


def _nodeprop_kernel(v_ref, w_ref, adj_ref, o_ref, *, k, W_win, N, h_dim):
    # v_ref:   (W*N, v_dim)       -- all window steps' node features, flattened
    # w_ref:   (k, v_dim, h_dim)  -- aggregator weights, native PyTorch layout
    # adj_ref: (W, k, N, N)
    # o_ref:   (k, W, N, h_dim)
    v = v_ref[...]  # load once, reuse across aggregators

    outs = []
    for i in range(k):
        # One MXU pass per aggregator covering every window step:
        #   (W*N, v_dim) @ (v_dim, h_dim) -> (W*N, h_dim)
        support_i = jnp.dot(v, w_ref[i], preferred_element_type=jnp.float32)
        for j in range(W_win):
            # Static sublane slice (N is a multiple of 8), tiny adj matmul.
            s_ij = support_i[j * N:(j + 1) * N, :]               # (N, h_dim)
            outs.append(jnp.dot(adj_ref[j, i], s_ij,
                                preferred_element_type=jnp.float32))

    # Stack in (i-major, j-minor) order -> (k*W, N, h_dim) -> (k, W, N, h_dim),
    # apply LeakyReLU (slope 0.01) in f32, and issue a SINGLE whole-slab store.
    H = jnp.stack(outs, axis=0).reshape(k, W_win, N, h_dim)
    H = jnp.where(H >= 0, H, 0.01 * H)
    o_ref[...] = H.astype(o_ref.dtype)


def node_prop(V, adj, weights):
    """V: [W, N, v_dim], adj: [W, k, N, N], weights: [k, v_dim, h_dim]
    returns H: [k, W, N, h_dim]"""
    W_win, N, v_dim = V.shape
    k, _, h_dim = weights.shape
    assert adj.shape == (W_win, k, N, N)
    assert weights.shape == (k, v_dim, h_dim)

    # Flatten V over (W, N): a free bitcast (contiguous leading dims).
    v_flat = V.reshape(W_win * N, v_dim)

    kernel = functools.partial(
        _nodeprop_kernel, k=k, W_win=W_win, N=N, h_dim=h_dim)

    return pl.pallas_call(
        kernel,
        out_shape=jax.ShapeDtypeStruct((k, W_win, N, h_dim), V.dtype),
        in_specs=[
            pl.BlockSpec(memory_space=pltpu.MemorySpace.VMEM),  # v_flat
            pl.BlockSpec(memory_space=pltpu.MemorySpace.VMEM),  # weights
            pl.BlockSpec(memory_space=pltpu.MemorySpace.VMEM),  # adj
        ],
        out_specs=pl.BlockSpec(memory_space=pltpu.MemorySpace.VMEM),
    )(v_flat, weights, adj)


def node_prop_ref(V, adj, weights):
    """Pure-JAX reference for correctness checking."""
    k = weights.shape[0]
    W_win = V.shape[0]
    H = []
    for i in range(k):
        h = []
        for j in range(W_win):
            support = V[j] @ weights[i]
            h.append(adj[j, i] @ support)
        H.append(jnp.stack(h, axis=0))
    H = jnp.stack(H, axis=0)
    return jnp.where(H >= 0, H, 0.01 * H)


def init_weights(key, k, v_dim, h_dim):
    """Xavier-uniform init (matches nn.init.xavier_uniform_), deterministic."""
    bound = math.sqrt(6.0 / (v_dim + h_dim))
    keys = jax.random.split(key, k)
    ws = [
        jax.random.uniform(kk, (v_dim, h_dim), jnp.float32, -bound, bound)
        for kk in keys
    ]
    return jnp.stack(ws, axis=0)  # [k, v_dim, h_dim]


if __name__ == "__main__":
    # Small shapes consistent with the module:
    #   window_size_o (W) = 3, k = 2 aggregators, N = 8 nodes,
    #   v_dim = 4 input features, h_dim = 32 hidden features.
    W_win, k, N, v_dim, h_dim = 3, 2, 8, 4, 32

    key = jax.random.PRNGKey(0)
    k_v, k_adj, k_w = jax.random.split(key, 3)

    V = jax.random.normal(k_v, (W_win, N, v_dim), jnp.float32)
    adj = jax.random.normal(k_adj, (W_win, k, N, N), jnp.float32)
    weights = init_weights(k_w, k, v_dim, h_dim)

    H = node_prop(V, adj, weights)
    H = jax.block_until_ready(H)

    H_ref = node_prop_ref(V, adj, weights)
    assert H.shape == (k, W_win, N, h_dim)
    assert jnp.allclose(H, H_ref, atol=1e-5, rtol=1e-5)

    print("KERNEL_OK")
</pallas_src>

<mosaic_0001>
module attributes {stable_mosaic.version = 11 : i64} {
  func.func @_nodeprop_kernel(%arg0: memref<24x4xf32, #tpu.memory_space<vmem>>, %arg1: memref<2x4x32xf32, #tpu.memory_space<vmem>>, %arg2: memref<3x2x8x8xf32, #tpu.memory_space<vmem>>, %arg3: memref<2x3x8x32xf32, #tpu.memory_space<vmem>>) attributes {dimension_semantics = [], scalar_prefetch = 0 : i64, scratch_operands = 0 : i64, tpu.core_type = #tpu.core_type<tc>} {
    %c0 = arith.constant 0 : index
    %c0_0 = arith.constant 0 : index
    %0 = vector.load %arg0[%c0, %c0_0] : memref<24x4xf32, #tpu.memory_space<vmem>>, vector<24x4xf32>
    %c0_1 = arith.constant 0 : index
    %c0_2 = arith.constant 0 : index
    %c0_3 = arith.constant 0 : index
    %1 = vector.load %arg1[%c0_1, %c0_2, %c0_3] : memref<2x4x32xf32, #tpu.memory_space<vmem>>, vector<1x4x32xf32>
    %2 = vector.shape_cast %1 : vector<1x4x32xf32> to vector<4x32xf32>
    %cst = arith.constant dense<0.000000e+00> : vector<24x32xf32>
    %3 = tpu.matmul %0, %2, %cst {dimension_numbers = #tpu.dot_dimension_numbers<[1], [0], [0], [1], [0, 0, 1, 1], [], []>} : vector<24x4xf32>, vector<4x32xf32>, vector<24x32xf32> -> vector<24x32xf32>
    %4 = vector.extract_strided_slice %3 {offsets = [0, 0], sizes = [8, 32], strides = [1, 1]} : vector<24x32xf32> to vector<8x32xf32>
    %c0_4 = arith.constant 0 : index
    %c0_5 = arith.constant 0 : index
    %c0_6 = arith.constant 0 : index
    %c0_7 = arith.constant 0 : index
    %5 = vector.load %arg2[%c0_4, %c0_5, %c0_6, %c0_7] : memref<3x2x8x8xf32, #tpu.memory_space<vmem>>, vector<1x1x8x8xf32>
    %6 = vector.shape_cast %5 : vector<1x1x8x8xf32> to vector<8x8xf32>
    %cst_8 = arith.constant dense<0.000000e+00> : vector<8x32xf32>
    %7 = tpu.matmul %6, %4, %cst_8 {dimension_numbers = #tpu.dot_dimension_numbers<[1], [0], [0], [1], [0, 0, 1, 1], [], []>} : vector<8x8xf32>, vector<8x32xf32>, vector<8x32xf32> -> vector<8x32xf32>
    %8 = vector.extract_strided_slice %3 {offsets = [8, 0], sizes = [8, 32], strides = [1, 1]} : vector<24x32xf32> to vector<8x32xf32>
    %c1 = arith.constant 1 : index
    %c0_9 = arith.constant 0 : index
    %c0_10 = arith.constant 0 : index
    %c0_11 = arith.constant 0 : index
    %9 = vector.load %arg2[%c1, %c0_9, %c0_10, %c0_11] : memref<3x2x8x8xf32, #tpu.memory_space<vmem>>, vector<1x1x8x8xf32>
    %10 = vector.shape_cast %9 : vector<1x1x8x8xf32> to vector<8x8xf32>
    %cst_12 = arith.constant dense<0.000000e+00> : vector<8x32xf32>
    %11 = tpu.matmul %10, %8, %cst_12 {dimension_numbers = #tpu.dot_dimension_numbers<[1], [0], [0], [1], [0, 0, 1, 1], [], []>} : vector<8x8xf32>, vector<8x32xf32>, vector<8x32xf32> -> vector<8x32xf32>
    %12 = vector.extract_strided_slice %3 {offsets = [16, 0], sizes = [8, 32], strides = [1, 1]} : vector<24x32xf32> to vector<8x32xf32>
    %c2 = arith.constant 2 : index
    %c0_13 = arith.constant 0 : index
    %c0_14 = arith.constant 0 : index
    %c0_15 = arith.constant 0 : index
    %13 = vector.load %arg2[%c2, %c0_13, %c0_14, %c0_15] : memref<3x2x8x8xf32, #tpu.memory_space<vmem>>, vector<1x1x8x8xf32>
    %14 = vector.shape_cast %13 : vector<1x1x8x8xf32> to vector<8x8xf32>
    %cst_16 = arith.constant dense<0.000000e+00> : vector<8x32xf32>
    %15 = tpu.matmul %14, %12, %cst_16 {dimension_numbers = #tpu.dot_dimension_numbers<[1], [0], [0], [1], [0, 0, 1, 1], [], []>} : vector<8x8xf32>, vector<8x32xf32>, vector<8x32xf32> -> vector<8x32xf32>
    %c1_17 = arith.constant 1 : index
    %c0_18 = arith.constant 0 : index
    %c0_19 = arith.constant 0 : index
    %16 = vector.load %arg1[%c1_17, %c0_18, %c0_19] : memref<2x4x32xf32, #tpu.memory_space<vmem>>, vector<1x4x32xf32>
    %17 = vector.shape_cast %16 : vector<1x4x32xf32> to vector<4x32xf32>
    %cst_20 = arith.constant dense<0.000000e+00> : vector<24x32xf32>
    %18 = tpu.matmul %0, %17, %cst_20 {dimension_numbers = #tpu.dot_dimension_numbers<[1], [0], [0], [1], [0, 0, 1, 1], [], []>} : vector<24x4xf32>, vector<4x32xf32>, vector<24x32xf32> -> vector<24x32xf32>
    %19 = vector.extract_strided_slice %18 {offsets = [0, 0], sizes = [8, 32], strides = [1, 1]} : vector<24x32xf32> to vector<8x32xf32>
    %c0_21 = arith.constant 0 : index
    %c1_22 = arith.constant 1 : index
    %c0_23 = arith.constant 0 : index
    %c0_24 = arith.constant 0 : index
    %20 = vector.load %arg2[%c0_21, %c1_22, %c0_23, %c0_24] : memref<3x2x8x8xf32, #tpu.memory_space<vmem>>, vector<1x1x8x8xf32>
    %21 = vector.shape_cast %20 : vector<1x1x8x8xf32> to vector<8x8xf32>
    %cst_25 = arith.constant dense<0.000000e+00> : vector<8x32xf32>
    %22 = tpu.matmul %21, %19, %cst_25 {dimension_numbers = #tpu.dot_dimension_numbers<[1], [0], [0], [1], [0, 0, 1, 1], [], []>} : vector<8x8xf32>, vector<8x32xf32>, vector<8x32xf32> -> vector<8x32xf32>
    %23 = vector.extract_strided_slice %18 {offsets = [8, 0], sizes = [8, 32], strides = [1, 1]} : vector<24x32xf32> to vector<8x32xf32>
    %c1_26 = arith.constant 1 : index
    %c1_27 = arith.constant 1 : index
    %c0_28 = arith.constant 0 : index
    %c0_29 = arith.constant 0 : index
    %24 = vector.load %arg2[%c1_26, %c1_27, %c0_28, %c0_29] : memref<3x2x8x8xf32, #tpu.memory_space<vmem>>, vector<1x1x8x8xf32>
    %25 = vector.shape_cast %24 : vector<1x1x8x8xf32> to vector<8x8xf32>
    %cst_30 = arith.constant dense<0.000000e+00> : vector<8x32xf32>
    %26 = tpu.matmul %25, %23, %cst_30 {dimension_numbers = #tpu.dot_dimension_numbers<[1], [0], [0], [1], [0, 0, 1, 1], [], []>} : vector<8x8xf32>, vector<8x32xf32>, vector<8x32xf32> -> vector<8x32xf32>
    %27 = vector.extract_strided_slice %18 {offsets = [16, 0], sizes = [8, 32], strides = [1, 1]} : vector<24x32xf32> to vector<8x32xf32>
    %c2_31 = arith.constant 2 : index
    %c1_32 = arith.constant 1 : index
    %c0_33 = arith.constant 0 : index
    %c0_34 = arith.constant 0 : index
    %28 = vector.load %arg2[%c2_31, %c1_32, %c0_33, %c0_34] : memref<3x2x8x8xf32, #tpu.memory_space<vmem>>, vector<1x1x8x8xf32>
    %29 = vector.shape_cast %28 : vector<1x1x8x8xf32> to vector<8x8xf32>
    %cst_35 = arith.constant dense<0.000000e+00> : vector<8x32xf32>
    %30 = tpu.matmul %29, %27, %cst_35 {dimension_numbers = #tpu.dot_dimension_numbers<[1], [0], [0], [1], [0, 0, 1, 1], [], []>} : vector<8x8xf32>, vector<8x32xf32>, vector<8x32xf32> -> vector<8x32xf32>
    %31 = vector.shape_cast %7 : vector<8x32xf32> to vector<1x8x32xf32>
    %32 = vector.shape_cast %11 : vector<8x32xf32> to vector<1x8x32xf32>
    %33 = vector.shape_cast %15 : vector<8x32xf32> to vector<1x8x32xf32>
    %34 = vector.shape_cast %22 : vector<8x32xf32> to vector<1x8x32xf32>
    %35 = vector.shape_cast %26 : vector<8x32xf32> to vector<1x8x32xf32>
    %36 = vector.shape_cast %30 : vector<8x32xf32> to vector<1x8x32xf32>
    %37 = tpu.concatenate %31, %32, %33, %34, %35, %36 in 0 : vector<1x8x32xf32>, vector<1x8x32xf32>, vector<1x8x32xf32>, vector<1x8x32xf32>, vector<1x8x32xf32>, vector<1x8x32xf32> -> vector<6x8x32xf32>
    %38 = vector.shape_cast %37 : vector<6x8x32xf32> to vector<2x3x8x32xf32>
    %cst_36 = arith.constant 0.000000e+00 : f32
    %39 = vector.broadcast %cst_36 : f32 to vector<2x3x8x32xf32>
    %40 = arith.cmpf oge, %38, %39 : vector<2x3x8x32xf32>
    %cst_37 = arith.constant 0.00999999977 : f32
    %41 = vector.broadcast %cst_37 : f32 to vector<2x3x8x32xf32>
    %42 = arith.mulf %41, %38 : vector<2x3x8x32xf32>
    %43 = arith.select %40, %38, %42 : vector<2x3x8x32xi1>, vector<2x3x8x32xf32>
    %c0_38 = arith.constant 0 : index
    %c0_39 = arith.constant 0 : index
    %c0_40 = arith.constant 0 : index
    %c0_41 = arith.constant 0 : index
    %44 = vector.load %arg3[%c0_38, %c0_39, %c0_40, %c0_41] : memref<2x3x8x32xf32, #tpu.memory_space<vmem>>, vector<2x3x8x32xf32>
    tpu.vector_store %arg3[%c0_38, %c0_39, %c0_40, %c0_41], %43 {strides = array<i32>} : memref<2x3x8x32xf32, #tpu.memory_space<vmem>>, vector<2x3x8x32xf32>,
    return
  }
}

</mosaic_0001>

<llo_original>
// kernel: tpu_custom_call.1
$region0: #{tpu_custom_call.1}
  #allocation0 [shape = 'u32[]', space=smem, size = 0x4, offset = 0x4, fixed_abs, tag = 'smem constant byte address 0x4 - core index']
  #allocation1 [shape = 'u32[144,128]{1,0:T(1,128)}', space=vmem, size = 0x12000, scoped, tag = 'internal scratch']
  %s0 = inlined_call_operand.vmem [shape: f32[24,4], index: 0, kind: input, shape index: {}]
  %s1 = inlined_call_operand.vmem [shape: f32[2,4,32], index: 1, kind: input, shape index: {}]
  %s2 = inlined_call_operand.hbm [shape: f32[3,2,8,8], index: 2, kind: input, shape index: {}]
  %s3 = inlined_call_operand.hbm [shape: f32[2,3,8,32], index: 3, kind: output, shape index: {}]
  %s4 = sld [smem:[#allocation0]]
  $region26: #{tpu_custom_call.1} parent=0
    _
  %s6 = ssub.s32 1, %s4
  %s7 = scalar_select 0, %s6, %s4
  $region1: #{tpu_custom_call.1} parent=0
    #allocation2 [shape = 'u8[24576]{0}', space=vmem, size = 0x6000, scoped, tag = 'input window, operand 2, single buffered']
    #allocation3 [shape = 's32[1]{0}', space=sflag, size = 0x4, scoped, tag = 'scoped memory for tpu_custom_call.1']
    #allocation4 [shape = 's32[1]{0}', space=sflag, size = 0x4, scoped, tag = 'scoped memory for tpu_custom_call.1']
    #allocation5 [shape = 'u8[24576]{0}', space=vmem, size = 0x6000, scoped, tag = 'output window, operand 0, single buffered']
    %8 = vsyncpa [#allocation3], 0
    %9 = vsyncpa [#allocation4], 0
    // Predicated region
    $region2: #{tpu_custom_call.1} parent=1 // pred_check
      _
    $region3: #{tpu_custom_call.1} parent=1 // pred_check_branch
      %11 = sbr.rel (0) target = $region5
    $region4: #{tpu_custom_call.1} parent=1 // pred_region
      _
    $region5: #{tpu_custom_call.1} parent=1 // pred_fallthru
      _
    // Predicated region
    $region6: #{tpu_custom_call.1} parent=1 // pred_check
      _
    $region7: #{tpu_custom_call.1} parent=1 // pred_check_branch
      %13 = sbr.rel (0) target = $region9
    $region8: #{tpu_custom_call.1} parent=1 // pred_region
      _
    $region9: #{tpu_custom_call.1} parent=1 // pred_fallthru
      _
    // Predicated region
    $region10: #{tpu_custom_call.1} parent=1 // pred_check
      _
    $region11: #{tpu_custom_call.1} parent=1 // pred_check_branch
      %15 = sbr.rel (0) target = $region13
    $region12: #{tpu_custom_call.1} parent=1 // pred_region
      %s17 = ssub.s32 768, 768
      %18 = vsyncadd [#allocation3], %s17
      %s19 = sshll.u32 [#allocation2], 4
      %s20 = int_to_ptr.vmem [resolvable:$true] %s19
      %25 = dma.hbm_to_vmem [thread:$0]  %s2, 768, %s20, [#allocation3], 128, 128, 8
    $region13: #{tpu_custom_call.1} parent=1 // pred_fallthru
      _
    // Predicated region
    $region14: #{tpu_custom_call.1} parent=1 // pred_check
      _
    $region15: #{tpu_custom_call.1} parent=1 // pred_check_branch
      %27 = sbr.rel (0) target = $region17
    $region16: #{tpu_custom_call.1} parent=1 // pred_region
      %28 = dma.done [#allocation3], 768
    $region17: #{tpu_custom_call.1} parent=1 // pred_fallthru
      _
    %v29 = vld [vmem:[%s0] sm:$0xff]
    %v30 = vld [vmem:[%s0 + $0x8] sm:$0xff]
    %v31 = vld [vmem:[%s0 + $0x10] sm:$0xff]
    %v32 = vld [vmem:[%s1] sm:$0xf]
    %vm33 = vcmask 31744
    %v35 = vsel %vm33, %v29, 0
    %v38 = vsel %vm33, %v30, 0
    %v41 = vsel %vm33, %v31, 0
    %vm43 = vcmask 1043456
    %v45 = vsel %vm43, %v32, 0
    %47 = vmatprep.subr.mxu0 0.0
    %48 = vmatpush1.msra.mxu0 %v45
    %49 = vmatprep.subr.mxu0 0.0
    %50 = vmatpush1.msra.mxu0 0.0
    %51 = vmatprep.subr.mxu0 0.0
    %52 = vmatpush1.msra.mxu0 0.0
    %53 = vmatprep.subr.mxu0 0.0
    %54 = vmatpush1.msra.mxu0 0.0
    %55 = vmatprep.subr.mxu0 0.0
    %56 = vmatpush1.msra.mxu0 0.0
    %57 = vmatprep.subr.mxu0 0.0
    %58 = vmatpush1.msra.mxu0 0.0
    %59 = vmatprep.subr.mxu0 0.0
    %60 = vmatpush1.msra.mxu0 0.0
    %61 = vmatprep.subr.mxu0 0.0
    %62 = vmatpush1.msra.mxu0 0.0
    %63 = vmatprep.subr.mxu0 0.0
    %64 = vmatpush1.msra.mxu0 0.0
    %65 = vmatprep.subr.mxu0 0.0
    %66 = vmatpush1.msra.mxu0 0.0
    %67 = vmatprep.subr.mxu0 0.0
    %68 = vmatpush1.msra.mxu0 0.0
    %69 = vmatprep.subr.mxu0 0.0
    %70 = vmatpush1.msra.mxu0 0.0
    %71 = vmatprep.subr.mxu0 0.0
    %72 = vmatpush1.msra.mxu0 0.0
    %73 = vmatprep.subr.mxu0 0.0
    %74 = vmatpush1.msra.mxu0 0.0
    %75 = vmatprep.subr.mxu0 0.0
    %76 = vmatpush1.msra.mxu0 0.0
    %77 = vmatprep.subr.mxu0 0.0
    %78 = vmatpush1.msra.mxu0 0.0
    %79 = vmatprep.subr.mxu0 0.0
    %80 = vmatpush1.msra.mxu0 0.0
    %81 = vmatprep.subr.mxu0 0.0
    %82 = vmatpush1.msra.mxu0 0.0
    %83 = vmatprep.subr.mxu0 0.0
    %84 = vmatpush1.msra.mxu0 0.0
    %85 = vmatprep.subr.mxu0 0.0
    %86 = vmatpush1.msra.mxu0 0.0
    %87 = vmatprep.subr.mxu0 0.0
    %88 = vmatpush1.msra.mxu0 0.0
    %89 = vmatprep.subr.mxu0 0.0
    %90 = vmatpush1.msra.mxu0 0.0
    %91 = vmatprep.subr.mxu0 0.0
    %92 = vmatpush1.msra.mxu0 0.0
    %93 = vmatprep.subr.mxu0 0.0
    %94 = vmatpush1.msra.mxu0 0.0
    %95 = vmatprep.subr.mxu0 0.0
    %96 = vmatpush1.msra.mxu0 0.0
    %97 = vmatprep.subr.mxu0 0.0
    %98 = vmatpush1.msra.mxu0 0.0
    %99 = vmatprep.subr.mxu0 0.0
    %100 = vmatpush1.msra.mxu0 0.0
    %101 = vmatprep.subr.mxu0 0.0
    %102 = vmatpush1.msra.mxu0 0.0
    %103 = vmatprep.subr.mxu0 0.0
    %104 = vmatpush1.msra.mxu0 0.0
    %105 = vmatprep.subr.mxu0 0.0
    %106 = vmatpush1.msra.mxu0 0.0
    %107 = vmatprep.subr.mxu0 0.0
    %108 = vmatpush1.msra.mxu0 0.0
    %109 = vmatprep.subr.mxu0 0.0
    %110 = vmatpush1.msra.mxu0 0.0
    %111 = vmatprep.mubr.f32.mxu0 0.0
    %112 = vmatmul.mubr.f32.gmra.mrb[0].mxu0 %v35
    %v113 = vpop.f32.mrb[0].mxu0
    %v114 = vadd.f32 0.0, %v113
    %v115 = vpop.f32.mrb[0].mxu0
    %116 = vmatprep.mubr.f32.mxu0 0.0
    %117 = vmatmul.mubr.f32.gmra.mrb[0].mxu0 %v38
    %v118 = vpop.f32.mrb[0].mxu0
    %v119 = vadd.f32 0.0, %v118
    %v120 = vpop.f32.mrb[0].mxu0
    %121 = vmatprep.mubr.f32.mxu0 0.0
    %122 = vmatmul.mubr.f32.gmra.mrb[0].mxu0 %v41
    %v123 = vpop.f32.mrb[0].mxu0
    %v124 = vadd.f32 0.0, %v123
    %v125 = vpop.f32.mrb[0].mxu0
    %126 = vdwg.mxu0
    %v127 = vld [vmem:[#allocation2] sm:$0xff]
    %vm128 = vcmask 64512
    %v130 = vsel %vm128, %v127, 0
    %132 = vmatprep.subr.mxu0 0.0
    %133 = vmatpush1.msra.mxu0 %v114
    %134 = vmatprep.subr.mxu0 0.0
    %135 = vmatpush1.msra.mxu0 0.0
    %136 = vmatprep.subr.mxu0 0.0
    %137 = vmatpush1.msra.mxu0 0.0
    %138 = vmatprep.subr.mxu0 0.0
    %139 = vmatpush1.msra.mxu0 0.0
    %140 = vmatprep.subr.mxu0 0.0
    %141 = vmatpush1.msra.mxu0 0.0
    %142 = vmatprep.subr.mxu0 0.0
    %143 = vmatpush1.msra.mxu0 0.0
    %144 = vmatprep.subr.mxu0 0.0
    %145 = vmatpush1.msra.mxu0 0.0
    %146 = vmatprep.subr.mxu0 0.0
    %147 = vmatpush1.msra.mxu0 0.0
    %148 = vmatprep.subr.mxu0 0.0
    %149 = vmatpush1.msra.mxu0 0.0
    %150 = vmatprep.subr.mxu0 0.0
    %151 = vmatpush1.msra.mxu0 0.0
    %152 = vmatprep.subr.mxu0 0.0
    %153 = vmatpush1.msra.mxu0 0.0
    %154 = vmatprep.subr.mxu0 0.0
    %155 = vmatpush1.msra.mxu0 0.0
    %156 = vmatprep.subr.mxu0 0.0
    %157 = vmatpush1.msra.mxu0 0.0
    %158 = vmatprep.subr.mxu0 0.0
    %159 = vmatpush1.msra.mxu0 0.0
    %160 = vmatprep.subr.mxu0 0.0
    %161 = vmatpush1.msra.mxu0 0.0
    %162 = vmatprep.subr.mxu0 0.0
    %163 = vmatpush1.msra.mxu0 0.0
    %164 = vmatprep.subr.mxu0 0.0
    %165 = vmatpush1.msra.mxu0 0.0
    %166 = vmatprep.subr.mxu0 0.0
    %167 = vmatpush1.msra.mxu0 0.0
    %168 = vmatprep.subr.mxu0 0.0
    %169 = vmatpush1.msra.mxu0 0.0
    %170 = vmatprep.subr.mxu0 0.0
    %171 = vmatpush1.msra.mxu0 0.0
    %172 = vmatprep.subr.mxu0 0.0
    %173 = vmatpush1.msra.mxu0 0.0
    %174 = vmatprep.subr.mxu0 0.0
    %175 = vmatpush1.msra.mxu0 0.0
    %176 = vmatprep.subr.mxu0 0.0
    %177 = vmatpush1.msra.mxu0 0.0
    %178 = vmatprep.subr.mxu0 0.0
    %179 = vmatpush1.msra.mxu0 0.0
    %180 = vmatprep.subr.mxu0 0.0
    %181 = vmatpush1.msra.mxu0 0.0
    %182 = vmatprep.subr.mxu0 0.0
    %183 = vmatpush1.msra.mxu0 0.0
    %184 = vmatprep.subr.mxu0 0.0
    %185 = vmatpush1.msra.mxu0 0.0
    %186 = vmatprep.subr.mxu0 0.0
    %187 = vmatpush1.msra.mxu0 0.0
    %188 = vmatprep.subr.mxu0 0.0
    %189 = vmatpush1.msra.mxu0 0.0
    %190 = vmatprep.subr.mxu0 0.0
    %191 = vmatpush1.msra.mxu0 0.0
    %192 = vmatprep.subr.mxu0 0.0
    %193 = vmatpush1.msra.mxu0 0.0
    %194 = vmatprep.subr.mxu0 0.0
    %195 = vmatpush1.msra.mxu0 0.0
    %196 = vmatprep.mubr.f32.mxu0 0.0
    %197 = vmatmul.mubr.f32.gmra.mrb[0].mxu0 %v130
    %v198 = vpop.f32.mrb[0].mxu0
    %v199 = vadd.f32 0.0, %v198
    %v200 = vpop.f32.mrb[0].mxu0
    %201 = vdwg.mxu0
    %s202 = scalar_lea.vmem [#allocation2], 16
    %v203 = vld [vmem:[%s202] sm:$0xff]
    %v205 = vsel %vm128, %v203, 0
    %207 = vmatprep.subr.mxu0 0.0
    %208 = vmatpush1.msra.mxu0 %v119
    %209 = vmatprep.subr.mxu0 0.0
    %210 = vmatpush1.msra.mxu0 0.0
    %211 = vmatprep.subr.mxu0 0.0
    %212 = vmatpush1.msra.mxu0 0.0
    %213 = vmatprep.subr.mxu0 0.0
    %214 = vmatpush1.msra.mxu0 0.0
    %215 = vmatprep.subr.mxu0 0.0
    %216 = vmatpush1.msra.mxu0 0.0
    %217 = vmatprep.subr.mxu0 0.0
    %218 = vmatpush1.msra.mxu0 0.0
    %219 = vmatprep.subr.mxu0 0.0
    %220 = vmatpush1.msra.mxu0 0.0
    %221 = vmatprep.subr.mxu0 0.0
    %222 = vmatpush1.msra.mxu0 0.0
    %223 = vmatprep.subr.mxu0 0.0
    %224 = vmatpush1.msra.mxu0 0.0
    %225 = vmatprep.subr.mxu0 0.0
    %226 = vmatpush1.msra.mxu0 0.0
    %227 = vmatprep.subr.mxu0 0.0
    %228 = vmatpush1.msra.mxu0 0.0
    %229 = vmatprep.subr.mxu0 0.0
    %230 = vmatpush1.msra.mxu0 0.0
    %231 = vmatprep.subr.mxu0 0.0
    %232 = vmatpush1.msra.mxu0 0.0
    %233 = vmatprep.subr.mxu0 0.0
    %234 = vmatpush1.msra.mxu0 0.0
    %235 = vmatprep.subr.mxu0 0.0
    %236 = vmatpush1.msra.mxu0 0.0
    %237 = vmatprep.subr.mxu0 0.0
    %238 = vmatpush1.msra.mxu0 0.0
    %239 = vmatprep.subr.mxu0 0.0
    %240 = vmatpush1.msra.mxu0 0.0
    %241 = vmatprep.subr.mxu0 0.0
    %242 = vmatpush1.msra.mxu0 0.0
    %243 = vmatprep.subr.mxu0 0.0
    %244 = vmatpush1.msra.mxu0 0.0
    %245 = vmatprep.subr.mxu0 0.0
    %246 = vmatpush1.msra.mxu0 0.0
    %247 = vmatprep.subr.mxu0 0.0
    %248 = vmatpush1.msra.mxu0 0.0
    %249 = vmatprep.subr.mxu0 0.0
    %250 = vmatpush1.msra.mxu0 0.0
    %251 = vmatprep.subr.mxu0 0.0
    %252 = vmatpush1.msra.mxu0 0.0
    %253 = vmatprep.subr.mxu0 0.0
    %254 = vmatpush1.msra.mxu0 0.0
    %255 = vmatprep.subr.mxu0 0.0
    %256 = vmatpush1.msra.mxu0 0.0
    %257 = vmatprep.subr.mxu0 0.0
    %258 = vmatpush1.msra.mxu0 0.0
    %259 = vmatprep.subr.mxu0 0.0
    %260 = vmatpush1.msra.mxu0 0.0
    %261 = vmatprep.subr.mxu0 0.0
    %262 = vmatpush1.msra.mxu0 0.0
    %263 = vmatprep.subr.mxu0 0.0
    %264 = vmatpush1.msra.mxu0 0.0
    %265 = vmatprep.subr.mxu0 0.0
    %266 = vmatpush1.msra.mxu0 0.0
    %267 = vmatprep.subr.mxu0 0.0
    %268 = vmatpush1.msra.mxu0 0.0
    %269 = vmatprep.subr.mxu0 0.0
    %270 = vmatpush1.msra.mxu0 0.0
    %271 = vmatprep.mubr.f32.mxu0 0.0
    %272 = vmatmul.mubr.f32.gmra.mrb[0].mxu0 %v205
    %v273 = vpop.f32.mrb[0].mxu0
    %v274 = vadd.f32 0.0, %v273
    %v275 = vpop.f32.mrb[0].mxu0
    %276 = vdwg.mxu0
    %s277 = scalar_lea.vmem [#allocation2], 32
    %v278 = vld [vmem:[%s277] sm:$0xff]
    %v280 = vsel %vm128, %v278, 0
    %282 = vmatprep.subr.mxu0 0.0
    %283 = vmatpush1.msra.mxu0 %v124
    %284 = vmatprep.subr.mxu0 0.0
    %285 = vmatpush1.msra.mxu0 0.0
    %286 = vmatprep.subr.mxu0 0.0
    %287 = vmatpush1.msra.mxu0 0.0
    %288 = vmatprep.subr.mxu0 0.0
    %289 = vmatpush1.msra.mxu0 0.0
    %290 = vmatprep.subr.mxu0 0.0
    %291 = vmatpush1.msra.mxu0 0.0
    %292 = vmatprep.subr.mxu0 0.0
    %293 = vmatpush1.msra.mxu0 0.0
    %294 = vmatprep.subr.mxu0 0.0
    %295 = vmatpush1.msra.mxu0 0.0
    %296 = vmatprep.subr.mxu0 0.0
    %297 = vmatpush1.msra.mxu0 0.0
    %298 = vmatprep.subr.mxu0 0.0
    %299 = vmatpush1.msra.mxu0 0.0
    %300 = vmatprep.subr.mxu0 0.0
    %301 = vmatpush1.msra.mxu0 0.0
    %302 = vmatprep.subr.mxu0 0.0
    %303 = vmatpush1.msra.mxu0 0.0
    %304 = vmatprep.subr.mxu0 0.0
    %305 = vmatpush1.msra.mxu0 0.0
    %306 = vmatprep.subr.mxu0 0.0
    %307 = vmatpush1.msra.mxu0 0.0
    %308 = vmatprep.subr.mxu0 0.0
    %309 = vmatpush1.msra.mxu0 0.0
    %310 = vmatprep.subr.mxu0 0.0
    %311 = vmatpush1.msra.mxu0 0.0
    %312 = vmatprep.subr.mxu0 0.0
    %313 = vmatpush1.msra.mxu0 0.0
    %314 = vmatprep.subr.mxu0 0.0
    %315 = vmatpush1.msra.mxu0 0.0
    %316 = vmatprep.subr.mxu0 0.0
    %317 = vmatpush1.msra.mxu0 0.0
    %318 = vmatprep.subr.mxu0 0.0
    %319 = vmatpush1.msra.mxu0 0.0
    %320 = vmatprep.subr.mxu0 0.0
    %321 = vmatpush1.msra.mxu0 0.0
    %322 = vmatprep.subr.mxu0 0.0
    %323 = vmatpush1.msra.mxu0 0.0
    %324 = vmatprep.subr.mxu0 0.0
    %325 = vmatpush1.msra.mxu0 0.0
    %326 = vmatprep.subr.mxu0 0.0
    %327 = vmatpush1.msra.mxu0 0.0
    %328 = vmatprep.subr.mxu0 0.0
    %329 = vmatpush1.msra.mxu0 0.0
    %330 = vmatprep.subr.mxu0 0.0
    %331 = vmatpush1.msra.mxu0 0.0
    %332 = vmatprep.subr.mxu0 0.0
    %333 = vmatpush1.msra.mxu0 0.0
    %334 = vmatprep.subr.mxu0 0.0
    %335 = vmatpush1.msra.mxu0 0.0
    %336 = vmatprep.subr.mxu0 0.0
    %337 = vmatpush1.msra.mxu0 0.0
    %338 = vmatprep.subr.mxu0 0.0
    %339 = vmatpush1.msra.mxu0 0.0
    %340 = vmatprep.subr.mxu0 0.0
    %341 = vmatpush1.msra.mxu0 0.0
    %342 = vmatprep.subr.mxu0 0.0
    %343 = vmatpush1.msra.mxu0 0.0
    %344 = vmatprep.subr.mxu0 0.0
    %345 = vmatpush1.msra.mxu0 0.0
    %346 = vmatprep.mubr.f32.mxu0 0.0
    %347 = vmatmul.mubr.f32.gmra.mrb[0].mxu0 %v280
    %v348 = vpop.f32.mrb[0].mxu0
    %v349 = vadd.f32 0.0, %v348
    %v350 = vpop.f32.mrb[0].mxu0
    %351 = vdwg.mxu0
    %s352 = scalar_lea.vmem %s1, 4
    %v353 = vld [vmem:[%s352] sm:$0xf]
    %v355 = vsel %vm43, %v353, 0
    %357 = vmatprep.subr.mxu0 0.0
    %358 = vmatpush1.msra.mxu0 %v355
    %359 = vmatprep.subr.mxu0 0.0
    %360 = vmatpush1.msra.mxu0 0.0
    %361 = vmatprep.subr.mxu0 0.0
    %362 = vmatpush1.msra.mxu0 0.0
    %363 = vmatprep.subr.mxu0 0.0
    %364 = vmatpush1.msra.mxu0 0.0
    %365 = vmatprep.subr.mxu0 0.0
    %366 = vmatpush1.msra.mxu0 0.0
    %367 = vmatprep.subr.mxu0 0.0
    %368 = vmatpush1.msra.mxu0 0.0
    %369 = vmatprep.subr.mxu0 0.0
    %370 = vmatpush1.msra.mxu0 0.0
    %371 = vmatprep.subr.mxu0 0.0
    %372 = vmatpush1.msra.mxu0 0.0
    %373 = vmatprep.subr.mxu0 0.0
    %374 = vmatpush1.msra.mxu0 0.0
    %375 = vmatprep.subr.mxu0 0.0
    %376 = vmatpush1.msra.mxu0 0.0
    %377 = vmatprep.subr.mxu0 0.0
    %378 = vmatpush1.msra.mxu0 0.0
    %379 = vmatprep.subr.mxu0 0.0
    %380 = vmatpush1.msra.mxu0 0.0
    %381 = vmatprep.subr.mxu0 0.0
    %382 = vmatpush1.msra.mxu0 0.0
    %383 = vmatprep.subr.mxu0 0.0
    %384 = vmatpush1.msra.mxu0 0.0
    %385 = vmatprep.subr.mxu0 0.0
    %386 = vmatpush1.msra.mxu0 0.0
    %387 = vmatprep.subr.mxu0 0.0
    %388 = vmatpush1.msra.mxu0 0.0
    %389 = vmatprep.subr.mxu0 0.0
    %390 = vmatpush1.msra.mxu0 0.0
    %391 = vmatprep.subr.mxu0 0.0
    %392 = vmatpush1.msra.mxu0 0.0
    %393 = vmatprep.subr.mxu0 0.0
    %394 = vmatpush1.msra.mxu0 0.0
    %395 = vmatprep.subr.mxu0 0.0
    %396 = vmatpush1.msra.mxu0 0.0
    %397 = vmatprep.subr.mxu0 0.0
    %398 = vmatpush1.msra.mxu0 0.0
    %399 = vmatprep.subr.mxu0 0.0
    %400 = vmatpush1.msra.mxu0 0.0
    %401 = vmatprep.subr.mxu0 0.0
    %402 = vmatpush1.msra.mxu0 0.0
    %403 = vmatprep.subr.mxu0 0.0
    %404 = vmatpush1.msra.mxu0 0.0
    %405 = vmatprep.subr.mxu0 0.0
    %406 = vmatpush1.msra.mxu0 0.0
    %407 = vmatprep.subr.mxu0 0.0
    %408 = vmatpush1.msra.mxu0 0.0
    %409 = vmatprep.subr.mxu0 0.0
    %410 = vmatpush1.msra.mxu0 0.0
    %411 = vmatprep.subr.mxu0 0.0
    %412 = vmatpush1.msra.mxu0 0.0
    %413 = vmatprep.subr.mxu0 0.0
    %414 = vmatpush1.msra.mxu0 0.0
    %415 = vmatprep.subr.mxu0 0.0
    %416 = vmatpush1.msra.mxu0 0.0
    %417 = vmatprep.subr.mxu0 0.0
    %418 = vmatpush1.msra.mxu0 0.0
    %419 = vmatprep.subr.mxu0 0.0
    %420 = vmatpush1.msra.mxu0 0.0
    %421 = vmatprep.mubr.f32.mxu0 0.0
    %422 = vmatmul.mubr.f32.gmra.mrb[0].mxu0 %v35
    %v423 = vpop.f32.mrb[0].mxu0
    %v424 = vadd.f32 0.0, %v423
    %v425 = vpop.f32.mrb[0].mxu0
    %426 = vmatprep.mubr.f32.mxu0 0.0
    %427 = vmatmul.mubr.f32.gmra.mrb[0].mxu0 %v38
    %v428 = vpop.f32.mrb[0].mxu0
    %v429 = vadd.f32 0.0, %v428
    %v430 = vpop.f32.mrb[0].mxu0
    %431 = vmatprep.mubr.f32.mxu0 0.0
    %432 = vmatmul.mubr.f32.gmra.mrb[0].mxu0 %v41
    %v433 = vpop.f32.mrb[0].mxu0
    %v434 = vadd.f32 0.0, %v433
    %v435 = vpop.f32.mrb[0].mxu0
    %436 = vdwg.mxu0
    %s437 = scalar_lea.vmem [#allocation2], 8
    %v438 = vld [vmem:[%s437] sm:$0xff]
    %v440 = vsel %vm128, %v438, 0
    %442 = vmatprep.subr.mxu0 0.0
    %443 = vmatpush1.msra.mxu0 %v424
    %444 = vmatprep.subr.mxu0 0.0
    %445 = vmatpush1.msra.mxu0 0.0
    %446 = vmatprep.subr.mxu0 0.0
    %447 = vmatpush1.msra.mxu0 0.0
    %448 = vmatprep.subr.mxu0 0.0
    %449 = vmatpush1.msra.mxu0 0.0
    %450 = vmatprep.subr.mxu0 0.0
    %451 = vmatpush1.msra.mxu0 0.0
    %452 = vmatprep.subr.mxu0 0.0
    %453 = vmatpush1.msra.mxu0 0.0
    %454 = vmatprep.subr.mxu0 0.0
    %455 = vmatpush1.msra.mxu0 0.0
    %456 = vmatprep.subr.mxu0 0.0
    %457 = vmatpush1.msra.mxu0 0.0
    %458 = vmatprep.subr.mxu0 0.0
    %459 = vmatpush1.msra.mxu0 0.0
    %460 = vmatprep.subr.mxu0 0.0
    %461 = vmatpush1.msra.mxu0 0.0
    %462 = vmatprep.subr.mxu0 0.0
    %463 = vmatpush1.msra.mxu0 0.0
    %464 = vmatprep.subr.mxu0 0.0
    %465 = vmatpush1.msra.mxu0 0.0
    %466 = vmatprep.subr.mxu0 0.0
    %467 = vmatpush1.msra.mxu0 0.0
    %468 = vmatprep.subr.mxu0 0.0
    %469 = vmatpush1.msra.mxu0 0.0
    %470 = vmatprep.subr.mxu0 0.0
    %471 = vmatpush1.msra.mxu0 0.0
    %472 = vmatprep.subr.mxu0 0.0
    %473 = vmatpush1.msra.mxu0 0.0
    %474 = vmatprep.subr.mxu0 0.0
    %475 = vmatpush1.msra.mxu0 0.0
    %476 = vmatprep.subr.mxu0 0.0
    %477 = vmatpush1.msra.mxu0 0.0
    %478 = vmatprep.subr.mxu0 0.0
    %479 = vmatpush1.msra.mxu0 0.0
    %480 = vmatprep.subr.mxu0 0.0
    %481 = vmatpush1.msra.mxu0 0.0
    %482 = vmatprep.subr.mxu0 0.0
    %483 = vmatpush1.msra.mxu0 0.0
    %484 = vmatprep.subr.mxu0 0.0
    %485 = vmatpush1.msra.mxu0 0.0
    %486 = vmatprep.subr.mxu0 0.0
    %487 = vmatpush1.msra.mxu0 0.0
    %488 = vmatprep.subr.mxu0 0.0
    %489 = vmatpush1.msra.mxu0 0.0
    %490 = vmatprep.subr.mxu0 0.0
    %491 = vmatpush1.msra.mxu0 0.0
    %492 = vmatprep.subr.mxu0 0.0
    %493 = vmatpush1.msra.mxu0 0.0
    %494 = vmatprep.subr.mxu0 0.0
    %495 = vmatpush1.msra.mxu0 0.0
    %496 = vmatprep.subr.mxu0 0.0
    %497 = vmatpush1.msra.mxu0 0.0
    %498 = vmatprep.subr.mxu0 0.0
    %499 = vmatpush1.msra.mxu0 0.0
    %500 = vmatprep.subr.mxu0 0.0
    %501 = vmatpush1.msra.mxu0 0.0
    %502 = vmatprep.subr.mxu0 0.0
    %503 = vmatpush1.msra.mxu0 0.0
    %504 = vmatprep.subr.mxu0 0.0
    %505 = vmatpush1.msra.mxu0 0.0
    %506 = vmatprep.mubr.f32.mxu0 0.0
    %507 = vmatmul.mubr.f32.gmra.mrb[0].mxu0 %v440
    %v508 = vpop.f32.mrb[0].mxu0
    %v509 = vadd.f32 0.0, %v508
    %v510 = vpop.f32.mrb[0].mxu0
    %511 = vdwg.mxu0
    %s512 = scalar_lea.vmem [#allocation2], 24
    %v513 = vld [vmem:[%s512] sm:$0xff]
    %v515 = vsel %vm128, %v513, 0
    %517 = vmatprep.subr.mxu0 0.0
    %518 = vmatpush1.msra.mxu0 %v429
    %519 = vmatprep.subr.mxu0 0.0
    %520 = vmatpush1.msra.mxu0 0.0
    %521 = vmatprep.subr.mxu0 0.0
    %522 = vmatpush1.msra.mxu0 0.0
    %523 = vmatprep.subr.mxu0 0.0
    %524 = vmatpush1.msra.mxu0 0.0
    %525 = vmatprep.subr.mxu0 0.0
    %526 = vmatpush1.msra.mxu0 0.0
    %527 = vmatprep.subr.mxu0 0.0
    %528 = vmatpush1.msra.mxu0 0.0
    %529 = vmatprep.subr.mxu0 0.0
    %530 = vmatpush1.msra.mxu0 0.0
    %531 = vmatprep.subr.mxu0 0.0
    %532 = vmatpush1.msra.mxu0 0.0
    %533 = vmatprep.subr.mxu0 0.0
    %534 = vmatpush1.msra.mxu0 0.0
    %535 = vmatprep.subr.mxu0 0.0
    %536 = vmatpush1.msra.mxu0 0.0
    %537 = vmatprep.subr.mxu0 0.0
    %538 = vmatpush1.msra.mxu0 0.0
    %539 = vmatprep.subr.mxu0 0.0
    %540 = vmatpush1.msra.mxu0 0.0
    %541 = vmatprep.subr.mxu0 0.0
    %542 = vmatpush1.msra.mxu0 0.0
    %543 = vmatprep.subr.mxu0 0.0
    %544 = vmatpush1.msra.mxu0 0.0
    %545 = vmatprep.subr.mxu0 0.0
    %546 = vmatpush1.msra.mxu0 0.0
    %547 = vmatprep.subr.mxu0 0.0
    %548 = vmatpush1.msra.mxu0 0.0
    %549 = vmatprep.subr.mxu0 0.0
    %550 = vmatpush1.msra.mxu0 0.0
    %551 = vmatprep.subr.mxu0 0.0
    %552 = vmatpush1.msra.mxu0 0.0
    %553 = vmatprep.subr.mxu0 0.0
    %554 = vmatpush1.msra.mxu0 0.0
    %555 = vmatprep.subr.mxu0 0.0
    %556 = vmatpush1.msra.mxu0 0.0
    %557 = vmatprep.subr.mxu0 0.0
    %558 = vmatpush1.msra.mxu0 0.0
    %559 = vmatprep.subr.mxu0 0.0
    %560 = vmatpush1.msra.mxu0 0.0
    %561 = vmatprep.subr.mxu0 0.0
    %562 = vmatpush1.msra.mxu0 0.0
    %563 = vmatprep.subr.mxu0 0.0
    %564 = vmatpush1.msra.mxu0 0.0
    %565 = vmatprep.subr.mxu0 0.0
    %566 = vmatpush1.msra.mxu0 0.0
    %567 = vmatprep.subr.mxu0 0.0
    %568 = vmatpush1.msra.mxu0 0.0
    %569 = vmatprep.subr.mxu0 0.0
    %570 = vmatpush1.msra.mxu0 0.0
    %571 = vmatprep.subr.mxu0 0.0
    %572 = vmatpush1.msra.mxu0 0.0
    %573 = vmatprep.subr.mxu0 0.0
    %574 = vmatpush1.msra.mxu0 0.0
    %575 = vmatprep.subr.mxu0 0.0
    %576 = vmatpush1.msra.mxu0 0.0
    %577 = vmatprep.subr.mxu0 0.0
    %578 = vmatpush1.msra.mxu0 0.0
    %579 = vmatprep.subr.mxu0 0.0
    %580 = vmatpush1.msra.mxu0 0.0
    %581 = vmatprep.mubr.f32.mxu0 0.0
    %582 = vmatmul.mubr.f32.gmra.mrb[0].mxu0 %v515
    %v583 = vpop.f32.mrb[0].mxu0
    %v584 = vadd.f32 0.0, %v583
    %v585 = vpop.f32.mrb[0].mxu0
    %586 = vdwg.mxu0
    %s587 = scalar_lea.vmem [#allocation2], 40
    %v588 = vld [vmem:[%s587] sm:$0xff]
    %v590 = vsel %vm128, %v588, 0
    %592 = vmatprep.subr.mxu0 0.0
    %593 = vmatpush1.msra.mxu0 %v434
    %594 = vmatprep.subr.mxu0 0.0
    %595 = vmatpush1.msra.mxu0 0.0
    %596 = vmatprep.subr.mxu0 0.0
    %597 = vmatpush1.msra.mxu0 0.0
    %598 = vmatprep.subr.mxu0 0.0
    %599 = vmatpush1.msra.mxu0 0.0
    %600 = vmatprep.subr.mxu0 0.0
    %601 = vmatpush1.msra.mxu0 0.0
    %602 = vmatprep.subr.mxu0 0.0
    %603 = vmatpush1.msra.mxu0 0.0
    %604 = vmatprep.subr.mxu0 0.0
    %605 = vmatpush1.msra.mxu0 0.0
    %606 = vmatprep.subr.mxu0 0.0
    %607 = vmatpush1.msra.mxu0 0.0
    %608 = vmatprep.subr.mxu0 0.0
    %609 = vmatpush1.msra.mxu0 0.0
    %610 = vmatprep.subr.mxu0 0.0
    %611 = vmatpush1.msra.mxu0 0.0
    %612 = vmatprep.subr.mxu0 0.0
    %613 = vmatpush1.msra.mxu0 0.0
    %614 = vmatprep.subr.mxu0 0.0
    %615 = vmatpush1.msra.mxu0 0.0
    %616 = vmatprep.subr.mxu0 0.0
    %617 = vmatpush1.msra.mxu0 0.0
    %618 = vmatprep.subr.mxu0 0.0
    %619 = vmatpush1.msra.mxu0 0.0
    %620 = vmatprep.subr.mxu0 0.0
    %621 = vmatpush1.msra.mxu0 0.0
    %622 = vmatprep.subr.mxu0 0.0
    %623 = vmatpush1.msra.mxu0 0.0
    %624 = vmatprep.subr.mxu0 0.0
    %625 = vmatpush1.msra.mxu0 0.0
    %626 = vmatprep.subr.mxu0 0.0
    %627 = vmatpush1.msra.mxu0 0.0
    %628 = vmatprep.subr.mxu0 0.0
    %629 = vmatpush1.msra.mxu0 0.0
    %630 = vmatprep.subr.mxu0 0.0
    %631 = vmatpush1.msra.mxu0 0.0
    %632 = vmatprep.subr.mxu0 0.0
    %633 = vmatpush1.msra.mxu0 0.0
    %634 = vmatprep.subr.mxu0 0.0
    %635 = vmatpush1.msra.mxu0 0.0
    %636 = vmatprep.subr.mxu0 0.0
    %637 = vmatpush1.msra.mxu0 0.0
    %638 = vmatprep.subr.mxu0 0.0
    %639 = vmatpush1.msra.mxu0 0.0
    %640 = vmatprep.subr.mxu0 0.0
    %641 = vmatpush1.msra.mxu0 0.0
    %642 = vmatprep.subr.mxu0 0.0
    %643 = vmatpush1.msra.mxu0 0.0
    %644 = vmatprep.subr.mxu0 0.0
    %645 = vmatpush1.msra.mxu0 0.0
    %646 = vmatprep.subr.mxu0 0.0
    %647 = vmatpush1.msra.mxu0 0.0
    %648 = vmatprep.subr.mxu0 0.0
    %649 = vmatpush1.msra.mxu0 0.0
    %650 = vmatprep.subr.mxu0 0.0
    %651 = vmatpush1.msra.mxu0 0.0
    %652 = vmatprep.subr.mxu0 0.0
    %653 = vmatpush1.msra.mxu0 0.0
    %654 = vmatprep.subr.mxu0 0.0
    %655 = vmatpush1.msra.mxu0 0.0
    %656 = vmatprep.mubr.f32.mxu0 0.0
    %657 = vmatmul.mubr.f32.gmra.mrb[0].mxu0 %v590
    %v658 = vpop.f32.mrb[0].mxu0
    %v659 = vadd.f32 0.0, %v658
    %v660 = vpop.f32.mrb[0].mxu0
    %661 = vdwg.mxu0
    %vm662 = vcmp.ge.f32.partialorder %v199, 0.0
    %vm663 = vcmp.ge.f32.partialorder %v274, 0.0
    %vm664 = vcmp.ge.f32.partialorder %v349, 0.0
    %vm665 = vcmp.ge.f32.partialorder %v509, 0.0
    %vm666 = vcmp.ge.f32.partialorder %v584, 0.0
    %vm667 = vcmp.ge.f32.partialorder %v659, 0.0
    %v668 = vmul.f32 %v199, 0.01
    %v669 = vmul.f32 %v274, 0.01
    %v670 = vmul.f32 %v349, 0.01
    %v671 = vmul.f32 %v509, 0.01
    %v672 = vmul.f32 %v584, 0.01
    %v673 = vmul.f32 %v659, 0.01
    %v674 = vsel %vm662, %v199, %v668
    %v675 = vsel %vm663, %v274, %v669
    %v676 = vsel %vm664, %v349, %v670
    %v677 = vsel %vm665, %v509, %v671
    %v678 = vsel %vm666, %v584, %v672
    %v679 = vsel %vm667, %v659, %v673
    %vm680 = vcmask 261120
    %681 = vst.msk [vmem:[#allocation5] sm:$0xff] %vm680, %v674
    %682 = vst.msk [vmem:[#allocation5 + $0x8] sm:$0xff] %vm680, %v675
    %683 = vst.msk [vmem:[#allocation5 + $0x10] sm:$0xff] %vm680, %v676
    %684 = vst.msk [vmem:[#allocation5 + $0x18] sm:$0xff] %vm680, %v677
    %685 = vst.msk [vmem:[#allocation5 + $0x20] sm:$0xff] %vm680, %v678
    %686 = vst.msk [vmem:[#allocation5 + $0x28] sm:$0xff] %vm680, %v679
    // Predicated region
    $region18: #{tpu_custom_call.1} parent=1 // pred_check
      _
    $region19: #{tpu_custom_call.1} parent=1 // pred_check_branch
      %688 = sbr.rel (0) target = $region21
    $region20: #{tpu_custom_call.1} parent=1 // pred_region
      %s690 = ssub.s32 768, 768
      %691 = vsyncadd [#allocation4], %s690
      %s692 = sshll.u32 [#allocation5], 4
      %s693 = int_to_ptr.vmem [resolvable:$true] %s692
      %698 = dma.vmem_to_hbm [thread:$0]  %s693, 768, %s3, [#allocation4], 128, 128, 8
    $region21: #{tpu_custom_call.1} parent=1 // pred_fallthru
      _
    // Predicated region
    $region22: #{tpu_custom_call.1} parent=1 // pred_check
      _
    $region23: #{tpu_custom_call.1} parent=1 // pred_check_branch
      %700 = sbr.rel (0) target = $region25
    $region24: #{tpu_custom_call.1} parent=1 // pred_region
      %701 = dma.done [#allocation4], 768
    $region25: #{tpu_custom_call.1} parent=1 // pred_fallthru
      _
    %702 = vsyncpa [#allocation3], 1
    %703 = vsyncpa [#allocation4], 1

</llo_original>
